<compile_context>
chip_gen: v5e
topology: v5e:2x2
jax: 0.10.0
libtpu: 0.0.40
codegen_flags: <defaults>
</compile_context>

<pallas_src>
import math

import jax
import jax.numpy as jnp
from jax.experimental import pallas as pl
from jax.experimental.pallas import tpu as pltpu


def _drop_path_kernel(scale_ref, x_ref, o_ref):
    # scale_ref: (TB, 1) per-sample keep/scale column (already in x.dtype).
    # x_ref / o_ref: (TB, TM) tiles of the flattened activations.
    o_ref[...] = x_ref[...] * scale_ref[...]     # lane-broadcast multiply


def _pick_tiles(B: int, M: int, itemsize: int, budget_bytes: int):
    """Choose (TB, TM) so that TB*TM*itemsize <= budget_bytes and both block
    dims are legal (multiple of the tile granularity or equal to the full
    array dim).  Blocks never exceed the array extent, so the only partial
    blocks are trailing ones, which Pallas masks automatically."""
    packing = max(1, 4 // itemsize)          # f32 -> 1, bf16 -> 2, int8 -> 4
    sub = 8 * packing                        # sublane-packing granule
    row_bytes = max(1, M) * itemsize

    # Minimum legal batch tile: the full batch when small, else one granule.
    tb_min = B if B <= sub else sub

    if row_bytes * tb_min <= budget_bytes:
        # Full-M rows fit: keep the whole feature axis (any M is legal when
        # TM == M) and grow TB in granule steps to fill the budget.
        if B <= sub:
            return B, M
        tb = min((B // sub) * sub,
                 max(sub, (budget_bytes // row_bytes) // sub * sub))
        return tb, M

    # Rows too large for the budget: keep TB minimal and tile the feature
    # axis in 128-lane multiples (partial last block, no padding needed).
    if M <= 128:
        return tb_min, M
    tm = min((M // 128) * 128,
             max(128, (budget_bytes // (tb_min * itemsize)) // 128 * 128))
    return tb_min, tm


def drop_path_pallas(x, key, drop_prob: float = 0.0, training: bool = False,
                     scale_by_keep: bool = True, donate_x: bool = False,
                     budget_bytes: int = 2 << 20, vmem_limit_bytes=None):
    """Pallas TPU implementation of timm's drop_path() (stochastic depth)."""
    if drop_prob == 0.0 or not training:
        return x
    keep_prob = 1.0 - drop_prob

    orig_shape = x.shape
    B = orig_shape[0]
    M = max(1, math.prod(orig_shape[1:]))        # prod of empty tuple == 1

    # Per-sample keep/scale factor, computed in plain JAX (no in-kernel PRNG),
    # pre-cast to x.dtype so the kernel multiply stays in the input dtype.
    keep = jax.random.bernoulli(key, p=keep_prob, shape=(B,))
    scale_val = (1.0 / keep_prob) if (scale_by_keep and keep_prob > 0.0) else 1.0
    scale = jnp.where(keep, jnp.float32(scale_val), jnp.float32(0.0))
    scale = scale.astype(x.dtype).reshape(B, 1)

    x2 = x.reshape(B, M)
    itemsize = jnp.dtype(x.dtype).itemsize
    TB, TM = _pick_tiles(B, M, itemsize, budget_bytes)
    grid = (pl.cdiv(B, TB), pl.cdiv(M, TM))

    out = pl.pallas_call(
        _drop_path_kernel,
        out_shape=jax.ShapeDtypeStruct((B, M), x.dtype),
        grid=grid,
        in_specs=[
            pl.BlockSpec((TB, 1), lambda i, j: (i, 0)),    # per-sample scale
            pl.BlockSpec((TB, TM), lambda i, j: (i, j)),   # activation tile
        ],
        out_specs=pl.BlockSpec((TB, TM), lambda i, j: (i, j)),
        compiler_params=pltpu.CompilerParams(
            dimension_semantics=("parallel", "parallel"),
            vmem_limit_bytes=vmem_limit_bytes),
        input_output_aliases=({1: 0} if donate_x else {}),
    )(scale, x2)

    return out.reshape(orig_shape)


if __name__ == "__main__":
    root = jax.random.PRNGKey(0)
    kx, kx2, kx3, kmask = jax.random.split(root, 4)

    drop_prob = 0.5
    keep_prob = 1.0 - drop_prob
    ok = True

    def ref_scale(batch, dtype):
        keep = jax.random.bernoulli(kmask, p=keep_prob, shape=(batch,))
        return jnp.where(keep, 1.0 / keep_prob, 0.0).astype(dtype)

    # ViT-style token tensor: (batch, seq, hidden); lane-aligned flattened row.
    B, N, D = 2, 8, 32
    x = jax.random.normal(kx, (B, N, D), dtype=jnp.float32)
    y = jax.block_until_ready(
        drop_path_pallas(x, kmask, drop_prob=drop_prob, training=True,
                         scale_by_keep=True))
    s = ref_scale(B, x.dtype)
    ok &= bool(jnp.allclose(y, x * s[:, None, None], rtol=1e-6, atol=1e-6))
    ok &= (y.shape == x.shape) and (y.dtype == x.dtype)

    # Non-lane-aligned trailing size (flattened row = 140): the full-M block
    # path means no padding and no tail slice are ever materialized.
    x_odd = jax.random.normal(kx2, (B, 7, 20), dtype=jnp.float32)
    y_odd = jax.block_until_ready(
        drop_path_pallas(x_odd, kmask, drop_prob=drop_prob, training=True))
    ok &= bool(jnp.allclose(y_odd, x_odd * s[:, None, None],
                            rtol=1e-6, atol=1e-6))

    # bf16 input with a tiny budget exercises sublane packing and the
    # feature-axis tiling path (TM multiple of 128, partial last block).
    x_bf = jax.random.normal(kx3, (4, 8, 64), dtype=jnp.bfloat16)
    y_bf = jax.block_until_ready(
        drop_path_pallas(x_bf, kmask, drop_prob=drop_prob, training=True,
                         budget_bytes=2048))
    s4 = ref_scale(4, x_bf.dtype)
    ok &= bool(jnp.allclose(y_bf.astype(jnp.float32),
                            (x_bf * s4[:, None, None]).astype(jnp.float32)))
    ok &= (y_bf.dtype == x_bf.dtype)

    # Eval mode and drop_prob == 0 must be the identity (no kernel launch).
    y_eval = drop_path_pallas(x, kmask, drop_prob=drop_prob, training=False)
    ok &= bool(jnp.allclose(jax.block_until_ready(y_eval), x))
    y_zero = drop_path_pallas(x, kmask, drop_prob=0.0, training=True)
    ok &= bool(jnp.allclose(jax.block_until_ready(y_zero), x))

    print("KERNEL_OK" if ok else "KERNEL_MISMATCH")
</pallas_src>

<mosaic_0001>
module attributes {stable_mosaic.version = 11 : i64} {
  func.func @_drop_path_kernel(%arg0: i32, %arg1: i32, %arg2: memref<2x1xf32, #tpu.memory_space<vmem>>, %arg3: memref<2x256xf32, #tpu.memory_space<vmem>>, %arg4: memref<2x256xf32, #tpu.memory_space<vmem>>) attributes {dimension_semantics = [#tpu.dimension_semantics<parallel>, #tpu.dimension_semantics<parallel>], iteration_bounds = array<i64: 1, 1>, scalar_prefetch = 0 : i64, scratch_operands = 0 : i64, tpu.core_type = #tpu.core_type<tc>, window_params = [{transform_indices = @transform_0, window_bounds = array<i64: 2, 1>}, {transform_indices = @transform_1, window_bounds = array<i64: 2, 256>}, {transform_indices = @transform_2, window_bounds = array<i64: 2, 256>}]} {
    %c0 = arith.constant 0 : index
    %c0_0 = arith.constant 0 : index
    %0 = vector.load %arg3[%c0, %c0_0] : memref<2x256xf32, #tpu.memory_space<vmem>>, vector<2x256xf32>
    %c0_1 = arith.constant 0 : index
    %c0_2 = arith.constant 0 : index
    %1 = vector.load %arg2[%c0_1, %c0_2] : memref<2x1xf32, #tpu.memory_space<vmem>>, vector<2x1xf32>
    %2 = vector.broadcast %1 : vector<2x1xf32> to vector<2x256xf32>
    %3 = arith.mulf %0, %2 : vector<2x256xf32>
    %c0_3 = arith.constant 0 : index
    %c0_4 = arith.constant 0 : index
    %4 = vector.load %arg4[%c0_3, %c0_4] : memref<2x256xf32, #tpu.memory_space<vmem>>, vector<2x256xf32>
    tpu.vector_store %arg4[%c0_3, %c0_4], %3 {strides = array<i32>} : memref<2x256xf32, #tpu.memory_space<vmem>>, vector<2x256xf32>,
    return
  }
  func.func @transform_0(%arg0: i32, %arg1: i32) -> (i32, i32) {
    %c0_i32 = arith.constant 0 : i32
    %c0_i32_0 = arith.constant 0 : i32
    return %arg0, %c0_i32 : i32, i32
  }
  func.func @transform_1(%arg0: i32, %arg1: i32) -> (i32, i32) {
    %c0_i32 = arith.constant 0 : i32
    return %arg0, %arg1 : i32, i32
  }
  func.func @transform_2(%arg0: i32, %arg1: i32) -> (i32, i32) {
    %c0_i32 = arith.constant 0 : i32
    return %arg0, %arg1 : i32, i32
  }
}

</mosaic_0001>

<llo_original>
// kernel: tpu_custom_call.1
$region0: #{tpu_custom_call.1}
  #allocation0 [shape = 'u32[]', space=smem, size = 0x4, offset = 0x4, fixed_abs, tag = 'smem constant byte address 0x4 - core index']
  #allocation1 [shape = 'u32[72,128]{1,0:T(1,128)}', space=vmem, size = 0x9000, scoped, tag = 'internal scratch']
  %s0 = inlined_call_operand.vmem [shape: f32[2,1], index: 0, kind: input, shape index: {}]
  %s1 = inlined_call_operand.hbm [shape: f32[2,256], index: 1, kind: input, shape index: {}]
  %s2 = inlined_call_operand.hbm [shape: f32[2,256], index: 2, kind: output, shape index: {}]
  %s3 = sld [smem:[#allocation0]]
  $region22: #{tpu_custom_call.1} parent=0
    _
  %s5 = ssub.s32 1, %s3
  %s6 = scalar_select 0, %s5, %s3
  $region1: #{tpu_custom_call.1} parent=0
    #allocation2 [shape = 'u8[2048]{0}', space=vmem, size = 0x800, scoped, tag = 'input window, operand 1, single buffered']
    #allocation3 [shape = 's32[1]{0}', space=sflag, size = 0x4, scoped, tag = 'scoped memory for tpu_custom_call.1']
    #allocation4 [shape = 's32[1]{0}', space=sflag, size = 0x4, scoped, tag = 'scoped memory for tpu_custom_call.1']
    #allocation5 [shape = 'u8[2048]{0}', space=vmem, size = 0x800, scoped, tag = 'output window, operand 0, single buffered']
    %7 = vsyncpa [#allocation3], 0
    %8 = vsyncpa [#allocation4], 0
    // Predicated region
    $region2: #{tpu_custom_call.1} parent=1 // pred_check
      _
    $region3: #{tpu_custom_call.1} parent=1 // pred_check_branch
      %10 = sbr.rel (0) target = $region5
    $region4: #{tpu_custom_call.1} parent=1 // pred_region
      _
    $region5: #{tpu_custom_call.1} parent=1 // pred_fallthru
      _
    // Predicated region
    $region6: #{tpu_custom_call.1} parent=1 // pred_check
      _
    $region7: #{tpu_custom_call.1} parent=1 // pred_check_branch
      %12 = sbr.rel (0) target = $region9
    $region8: #{tpu_custom_call.1} parent=1 // pred_region
      %14 = vsyncadd [#allocation3], 0
      %s16 = sshll.u32 %s1, 4
      %s17 = int_to_ptr.hbm [resolvable:$true] %s16
      %s18 = sshll.u32 [#allocation2], 4
      %s19 = int_to_ptr.vmem [resolvable:$true] %s18
      %21 = dma.hbm_to_vmem [thread:$0]  %s17, 64, %s19, [#allocation3]
    $region9: #{tpu_custom_call.1} parent=1 // pred_fallthru
      _
    // Predicated region
    $region10: #{tpu_custom_call.1} parent=1 // pred_check
      _
    $region11: #{tpu_custom_call.1} parent=1 // pred_check_branch
      %23 = sbr.rel (0) target = $region13
    $region12: #{tpu_custom_call.1} parent=1 // pred_region
      %25 = dma.done [#allocation3], 64
    $region13: #{tpu_custom_call.1} parent=1 // pred_fallthru
      _
    %v26 = vld [vmem:[#allocation2] sm:$0xf]
    %v27 = vld [vmem:[%s0] sm:$0x3]
    %29 = vset.pattern.permute.xlu0 0
    %30 = vperm.xlu0 %29, %v27
    %v31 = vpop.permute.xlu0 %30
    %v33 = vunpack.c.l.s4 269488144
    %v34 = vunpack.c.0.s8 %v33
    %v35 = vperm.slane %v31, %v34
    %v37 = vmul.f32 %v26, %v35
    %38 = vst [vmem:[#allocation5] sm:$0xf] %v37
    // Predicated region
    $region14: #{tpu_custom_call.1} parent=1 // pred_check
      _
    $region15: #{tpu_custom_call.1} parent=1 // pred_check_branch
      %40 = sbr.rel (0) target = $region17
    $region16: #{tpu_custom_call.1} parent=1 // pred_region
      %42 = vsyncadd [#allocation4], 0
      %s44 = sshll.u32 [#allocation5], 4
      %s45 = int_to_ptr.vmem [resolvable:$true] %s44
      %s46 = sshll.u32 %s2, 4
      %s47 = int_to_ptr.hbm [resolvable:$true] %s46
      %49 = dma.vmem_to_hbm [thread:$0]  %s45, 64, %s47, [#allocation4]
    $region17: #{tpu_custom_call.1} parent=1 // pred_fallthru
      _
    // Predicated region
    $region18: #{tpu_custom_call.1} parent=1 // pred_check
      _
    $region19: #{tpu_custom_call.1} parent=1 // pred_check_branch
      %51 = sbr.rel (0) target = $region21
    $region20: #{tpu_custom_call.1} parent=1 // pred_region
      %53 = dma.done [#allocation4], 64
    $region21: #{tpu_custom_call.1} parent=1 // pred_fallthru
      _
    %54 = vsyncpa [#allocation3], 1
    %55 = vsyncpa [#allocation4], 1

</llo_original>
